<compile_context>
chip_gen: v5e
topology: v5e:2x2
jax: 0.10.0
libtpu: 0.0.40
codegen_flags: <defaults>
</compile_context>

<pallas_src>
import jax
import jax.numpy as jnp
from jax.experimental import pallas as pl
from jax.experimental.pallas import tpu as pltpu

_MiB = 1 << 20


def _vmem_capacity_bytes():
    """Per-core VMEM capacity (generation-aware) with a conservative fallback."""
    try:
        cap = int(getattr(pltpu.get_tpu_info(), "vmem_capacity_bytes", 0))
        if cap > 0:
            return cap
    except Exception:
        pass
    return 64 * _MiB  # v7x per-TensorCore VMEM (smallest current generation)


def _make_grady_kernel(h, w, reverse, pad):
    """Kernel over flattened slabs: x_ref (B, h*w) -> o_ref (B, ho*w)."""

    def kernel(x_ref, o_ref):
        x = x_ref[...]                               # (B, h*w), lane-dense
        lo = x[:, : (h - 1) * w]                     # rows 0 .. h-2
        hi = x[:, w:]                                # rows 1 .. h-1
        # conv weight [[-1],[1]] -> out[i] = x[i+1] - x[i]   (reverse=False)
        # conv weight [[ 1],[-1]] -> out[i] = x[i]  - x[i+1] (reverse=True)
        d = (lo - hi) if reverse else (hi - lo)
        d = d.astype(o_ref.dtype)
        if pad:
            # Replicate padding + the exact [-1, 1] weights make the first and
            # last output rows identically zero: write them directly with two
            # narrow stores instead of staging a full-width concatenate (saves
            # a block-sized temporary / vreg pressure).  NOTE: only valid for
            # these fixed weights; a learned/scaled weight would invalidate it.
            z = jnp.zeros((o_ref.shape[0], w), dtype=o_ref.dtype)
            o_ref[:, :w] = z                         # output row 0
            o_ref[:, w:h * w] = d                    # interior rows 1 .. h-1
            o_ref[:, h * w:] = z                     # output row h
        else:
            o_ref[...] = d

    return kernel


def _slabs_per_block(num_slabs, bytes_per_slab, *, target_bytes, max_block_bytes):
    """Slabs per grid step: sublane-aligned (multiple of 8), ~target_bytes of
    in+out per block, never above max_block_bytes (double-buffer VMEM budget),
    and >=4 grid steps when there is enough work so dual-TC parts get >=2
    steps per TensorCore (keeps the software pipeline primed on every core)."""
    if num_slabs <= 8:
        return num_slabs                             # block == full dim: legal
    b = int(target_bytes // max(1, bytes_per_slab))
    b_cap = int(max_block_bytes // max(1, bytes_per_slab))
    b = min(b, b_cap)
    b = max(8, (b // 8) * 8)
    quarter = ((num_slabs // 4) // 8) * 8            # >= 2 steps per core
    if quarter >= 8:
        b = min(b, quarter)
    return max(8, min(b, num_slabs))
    # TODO(synk): slabs so large that even 8 per block exceed the VMEM budget
    # (huge H*W) need an H-tiling grid axis with a 1-row (W-lane) halo.


def gradient_y(x, *, reverse=False, pad=True):
    """Pallas equivalent of zero.torch.layer.GradientY.forward.

    x: (N, C, H, W). Returns (N, C, H+1, W) if pad else (N, C, H-1, W).
    """
    n, c, h, w = x.shape
    if not pad and h < 2:
        raise ValueError("pad=False requires H >= 2 (output height would be H-1)")
    ho = h + 1 if pad else h - 1
    if pad and h == 1:
        # Both output rows are x[0] - x[0] == 0; avoid zero-width kernel slices.
        return jnp.zeros((n, c, ho, w), dtype=x.dtype)

    s = n * c
    in_w = h * w
    out_w = ho * w
    itemsize = jnp.dtype(x.dtype).itemsize
    slab_bytes = (in_w + out_w) * itemsize

    xf = x.reshape(s, in_w)                          # free row-major reshape

    cap = _vmem_capacity_bytes()
    budget = (3 * cap) // 4                          # ~48 MiB v7x, ~96 MiB v5e/v6e
    b = _slabs_per_block(
        s, slab_bytes,
        target_bytes=6 * _MiB,                       # HBM-roofline sweet spot
        max_block_bytes=budget // 2,                 # so 2x(in+out) fits budget
    )
    block_bytes = b * slab_bytes
    # Enough for double-buffered in+out blocks plus headroom, within capacity.
    vmem_limit = int(min(cap, max(budget, 2 * block_bytes + 2 * _MiB)))

    out = pl.pallas_call(
        _make_grady_kernel(h, w, reverse, pad),
        out_shape=jax.ShapeDtypeStruct((s, out_w), x.dtype),
        grid=(pl.cdiv(s, b),),
        # When s % b != 0 the final block is partial; Pallas masks the
        # out-of-range writeback, so this remains correct as-is.
        in_specs=[pl.BlockSpec((b, in_w), lambda i: (i, 0))],
        out_specs=pl.BlockSpec((b, out_w), lambda i: (i, 0)),
        compiler_params=pltpu.CompilerParams(
            dimension_semantics=("parallel",),
            vmem_limit_bytes=vmem_limit,
        ),
        cost_estimate=pl.CostEstimate(
            flops=s * (h - 1) * w,
            transcendentals=0,
            bytes_accessed=s * slab_bytes,
        ),
    )(xf)

    return out.reshape(n, c, ho, w)


def _reference(x, *, reverse=False, pad=True):
    # pure-JAX reference mirroring the torch module
    xr = x
    if pad:
        xr = jnp.concatenate([x[:, :, :1, :], x, x[:, :, -1:, :]], axis=2)
    d = xr[:, :, 1:, :] - xr[:, :, :-1, :]
    return -d if reverse else d


if __name__ == "__main__":
    key = jax.random.PRNGKey(0)
    x = jax.random.normal(key, (2, 4, 16, 16), dtype=jnp.float32)

    out = jax.block_until_ready(gradient_y(x, reverse=False, pad=True))
    ref = _reference(x, reverse=False, pad=True)
    assert out.shape == (2, 4, 17, 16), out.shape
    assert jnp.allclose(out, ref, atol=1e-6), "mismatch vs reference (pad)"

    out_r = jax.block_until_ready(gradient_y(x, reverse=True, pad=False))
    assert out_r.shape == (2, 4, 15, 16), out_r.shape
    assert jnp.allclose(out_r, _reference(x, reverse=True, pad=False), atol=1e-6), \
        "mismatch vs reference (reverse, no pad)"

    out_rp = jax.block_until_ready(gradient_y(x, reverse=True, pad=True))
    assert jnp.allclose(out_rp, _reference(x, reverse=True, pad=True), atol=1e-6), \
        "mismatch vs reference (reverse, pad)"

    print("KERNEL_OK")
</pallas_src>

<mosaic_0001>
module attributes {stable_mosaic.version = 11 : i64} {
  func.func @kernel(%arg0: i32, %arg1: memref<8x256xf32, #tpu.memory_space<vmem>>, %arg2: memref<8x272xf32, #tpu.memory_space<vmem>>) attributes {dimension_semantics = [#tpu.dimension_semantics<parallel>], iteration_bounds = array<i64: 1>, scalar_prefetch = 0 : i64, scratch_operands = 0 : i64, tpu.core_type = #tpu.core_type<tc>, window_params = [{transform_indices = @transform_0, window_bounds = array<i64: 8, 256>}, {transform_indices = @transform_1, window_bounds = array<i64: 8, 272>}]} {
    %c0 = arith.constant 0 : index
    %c0_0 = arith.constant 0 : index
    %0 = vector.load %arg1[%c0, %c0_0] : memref<8x256xf32, #tpu.memory_space<vmem>>, vector<8x256xf32>
    %1 = vector.extract_strided_slice %0 {offsets = [0, 0], sizes = [8, 240], strides = [1, 1]} : vector<8x256xf32> to vector<8x240xf32>
    %2 = vector.extract_strided_slice %0 {offsets = [0, 16], sizes = [8, 240], strides = [1, 1]} : vector<8x256xf32> to vector<8x240xf32>
    %3 = arith.subf %2, %1 : vector<8x240xf32>
    %cst = arith.constant 0.000000e+00 : f32
    %4 = vector.broadcast %cst : f32 to vector<8x16xf32>
    %c0_1 = arith.constant 0 : index
    %c0_2 = arith.constant 0 : index
    %5 = vector.load %arg2[%c0_1, %c0_2] : memref<8x272xf32, #tpu.memory_space<vmem>>, vector<8x16xf32>
    tpu.vector_store %arg2[%c0_1, %c0_2], %4 {strides = array<i32>} : memref<8x272xf32, #tpu.memory_space<vmem>>, vector<8x16xf32>,
    %c0_3 = arith.constant 0 : index
    %c16 = arith.constant 16 : index
    %6 = vector.load %arg2[%c0_3, %c16] : memref<8x272xf32, #tpu.memory_space<vmem>>, vector<8x240xf32>
    tpu.vector_store %arg2[%c0_3, %c16], %3 {strides = array<i32>} : memref<8x272xf32, #tpu.memory_space<vmem>>, vector<8x240xf32>,
    %c0_4 = arith.constant 0 : index
    %c256 = arith.constant 256 : index
    %7 = vector.load %arg2[%c0_4, %c256] : memref<8x272xf32, #tpu.memory_space<vmem>>, vector<8x16xf32>
    tpu.vector_store %arg2[%c0_4, %c256], %4 {strides = array<i32>} : memref<8x272xf32, #tpu.memory_space<vmem>>, vector<8x16xf32>,
    return
  }
  func.func @transform_0(%arg0: i32) -> (i32, i32) {
    %c0_i32 = arith.constant 0 : i32
    %c0_i32_0 = arith.constant 0 : i32
    return %arg0, %c0_i32 : i32, i32
  }
  func.func @transform_1(%arg0: i32) -> (i32, i32) {
    %c0_i32 = arith.constant 0 : i32
    %c0_i32_0 = arith.constant 0 : i32
    return %arg0, %c0_i32 : i32, i32
  }
}

</mosaic_0001>

<llo_original>
// kernel: tpu_custom_call.1
$region0: #{tpu_custom_call.1}
  #allocation0 [shape = 'u32[]', space=smem, size = 0x4, offset = 0x4, fixed_abs, tag = 'smem constant byte address 0x4 - core index']
  #allocation1 [shape = 'u32[72,128]{1,0:T(1,128)}', space=vmem, size = 0x9000, scoped, tag = 'internal scratch']
  %s0 = inlined_call_operand.hbm [shape: f32[8,256], index: 0, kind: input, shape index: {}]
  %s1 = inlined_call_operand.hbm [shape: f32[8,272], index: 1, kind: output, shape index: {}]
  %s2 = sld [smem:[#allocation0]]
  $region18: #{tpu_custom_call.1} parent=0
    _
  %s4 = ssub.s32 1, %s2
  %s5 = scalar_select 0, %s4, %s2
  $region1: #{tpu_custom_call.1} parent=0
    #allocation2 [shape = 'u8[8192]{0}', space=vmem, size = 0x2000, scoped, tag = 'input window, operand 0, single buffered']
    #allocation3 [shape = 's32[1]{0}', space=sflag, size = 0x4, scoped, tag = 'scoped memory for tpu_custom_call.1']
    #allocation4 [shape = 's32[1]{0}', space=sflag, size = 0x4, scoped, tag = 'scoped memory for tpu_custom_call.1']
    #allocation5 [shape = 'u8[12288]{0}', space=vmem, size = 0x3000, scoped, tag = 'output window, operand 0, single buffered']
    %6 = vsyncpa [#allocation3], 0
    %7 = vsyncpa [#allocation4], 0
    // Predicated region
    $region2: #{tpu_custom_call.1} parent=1 // pred_check
      _
    $region3: #{tpu_custom_call.1} parent=1 // pred_check_branch
      %9 = sbr.rel (0) target = $region5
    $region4: #{tpu_custom_call.1} parent=1 // pred_region
      %11 = vsyncadd [#allocation3], 0
      %s13 = sshll.u32 %s0, 4
      %s14 = int_to_ptr.hbm [resolvable:$true] %s13
      %s15 = sshll.u32 [#allocation2], 4
      %s16 = int_to_ptr.vmem [resolvable:$true] %s15
      %18 = dma.hbm_to_vmem [thread:$0]  %s14, 256, %s16, [#allocation3]
    $region5: #{tpu_custom_call.1} parent=1 // pred_fallthru
      _
    // Predicated region
    $region6: #{tpu_custom_call.1} parent=1 // pred_check
      _
    $region7: #{tpu_custom_call.1} parent=1 // pred_check_branch
      %20 = sbr.rel (0) target = $region9
    $region8: #{tpu_custom_call.1} parent=1 // pred_region
      %22 = dma.done [#allocation3], 256
    $region9: #{tpu_custom_call.1} parent=1 // pred_fallthru
      _
    %v23 = vld [vmem:[#allocation2] sm:$0xff]
    %v24 = vld [vmem:[#allocation2 + $0x8] sm:$0xff]
    %27 = vrot.lane.b32.xlu0 %v23, 16
    %v28 = vpop.permute.xlu0 %27
    %29 = vrot.lane.b32.xlu0 %v24, 16
    %v30 = vpop.permute.xlu0 %29
    %vm31 = vcmask 130048
    %v32 = vsel %vm31, %v28, %v30
    %v35 = vsub.f32 %v23, %v28
    %v36 = vsub.f32 %v24, %v32
    %37 = vst.msk [vmem:[#allocation5] sm:$0xff] %vm31, 0.0
    %vm38 = vcmask 1047680
    %39 = vst.msk [vmem:[#allocation5] sm:$0xff] %vm38, %v35
    %40 = vst [vmem:[#allocation5 + $0x8] sm:$0xff] %v36
    %41 = vst.msk [vmem:[#allocation5 + $0x10] sm:$0xff] %vm31, 0.0
    // Predicated region
    $region10: #{tpu_custom_call.1} parent=1 // pred_check
      _
    $region11: #{tpu_custom_call.1} parent=1 // pred_check_branch
      %43 = sbr.rel (0) target = $region13
    $region12: #{tpu_custom_call.1} parent=1 // pred_region
      %45 = vsyncadd [#allocation4], 0
      %s47 = sshll.u32 [#allocation5], 4
      %s48 = int_to_ptr.vmem [resolvable:$true] %s47
      %s49 = sshll.u32 %s1, 4
      %s50 = int_to_ptr.hbm [resolvable:$true] %s49
      %52 = dma.vmem_to_hbm [thread:$0]  %s48, 384, %s50, [#allocation4]
    $region13: #{tpu_custom_call.1} parent=1 // pred_fallthru
      _
    // Predicated region
    $region14: #{tpu_custom_call.1} parent=1 // pred_check
      _
    $region15: #{tpu_custom_call.1} parent=1 // pred_check_branch
      %54 = sbr.rel (0) target = $region17
    $region16: #{tpu_custom_call.1} parent=1 // pred_region
      %56 = dma.done [#allocation4], 384
    $region17: #{tpu_custom_call.1} parent=1 // pred_fallthru
      _
    %57 = vsyncpa [#allocation3], 1
    %58 = vsyncpa [#allocation4], 1

</llo_original>
